<compile_context>
chip_gen: v7x
topology: tpu7x:2x2x1
jax: 0.10.0
libtpu: 0.0.40
codegen_flags: <defaults>
</compile_context>

<pallas_src>
import functools

import jax
import jax.numpy as jnp
from jax.experimental import pallas as pl
from jax.experimental.pallas import tpu as pltpu

BN_EPS = 1e-5   # PyTorch BatchNorm1d default
LANE = 128
SUBLANE = 8


def _round_up(x, m):
    return (x + m - 1) // m * m


def _proj_stats_kernel(x_ref, w_ref, b_ref, s_ref, stats_ref, *,
                       tile_n, true_n, needs_mask):
    """Per-tile: s = sigmoid(x @ W + b); emit s and partial [sum, sum_sq] columns."""
    x = x_ref[...]                                          # [tile_n, mono_dim] f32
    w = w_ref[...]                                          # [mono_dim, c_pad]  f32
    z = jnp.dot(x, w, preferred_element_type=jnp.float32) + b_ref[...]
    s = jax.nn.sigmoid(z)                                   # EUP transcendental
    s_ref[...] = s

    if needs_mask:
        # Zero rows that are batch padding so they don't pollute batch stats.
        row = (pl.program_id(0) * tile_n
               + jax.lax.broadcasted_iota(jnp.int32, (tile_n, 1), 0))
        s_m = jnp.where(row < true_n, s, 0.0)
    else:
        s_m = s

    # Column sums on the MXU (idle after the tiny K matmul) instead of XLU reduces.
    ones_row = jnp.ones((1, tile_n), jnp.float32)
    psum = jnp.dot(ones_row, s_m, preferred_element_type=jnp.float32)          # [1, c_pad]
    psumsq = jnp.dot(ones_row, s_m * s_m, preferred_element_type=jnp.float32)  # [1, c_pad]
    stats_ref[...] = jnp.concatenate([psum, psumsq], axis=0)[None]             # [1, 2, c_pad]


def _bn_affine_kernel(s_ref, a_ref, c_ref, o_ref):
    """Folded BatchNorm affine: o = s * a + c (single multiply-add per element)."""
    o_ref[...] = s_ref[...] * a_ref[...] + c_ref[...]


@jax.jit
def embedding_proj(x, encoder, encoder_bias, bn_gamma, bn_beta):
    """x: [N, mono_dim] -> [N, common_dim] f32 (training-mode BatchNorm)."""
    n, mono_dim = x.shape
    common_dim = encoder.shape[1]

    # Lane-dense feature dim, sublane-aligned batch tile (fits all VMEM budgets,
    # including v7x's 64 MiB, with large margin at these widths).
    c_pad = _round_up(common_dim, LANE)
    tile_n = 512 if n >= 512 else _round_up(n, SUBLANE)
    n_pad = _round_up(n, tile_n)
    num_tiles = n_pad // tile_n
    needs_mask = n_pad != n

    x32 = x.astype(jnp.float32)
    xp = jnp.pad(x32, ((0, n_pad - n), (0, 0)))
    wp = jnp.pad(encoder.astype(jnp.float32), ((0, 0), (0, c_pad - common_dim)))
    bp = jnp.pad(encoder_bias.astype(jnp.float32),
                 (0, c_pad - common_dim)).reshape(1, c_pad)
    gp = jnp.pad(bn_gamma.astype(jnp.float32),
                 (0, c_pad - common_dim)).reshape(1, c_pad)
    bep = jnp.pad(bn_beta.astype(jnp.float32),
                  (0, c_pad - common_dim)).reshape(1, c_pad)

    kernel1 = functools.partial(
        _proj_stats_kernel, tile_n=tile_n, true_n=n, needs_mask=needs_mask)

    s, stats = pl.pallas_call(
        kernel1,
        grid=(num_tiles,),
        in_specs=[
            pl.BlockSpec((tile_n, mono_dim), lambda i: (i, 0)),
            pl.BlockSpec((mono_dim, c_pad), lambda i: (0, 0)),
            pl.BlockSpec((1, c_pad), lambda i: (0, 0)),
        ],
        out_specs=[
            pl.BlockSpec((tile_n, c_pad), lambda i: (i, 0)),
            pl.BlockSpec((1, 2, c_pad), lambda i: (i, 0, 0)),
        ],
        out_shape=[
            jax.ShapeDtypeStruct((n_pad, c_pad), jnp.float32),
            jax.ShapeDtypeStruct((num_tiles, 2, c_pad), jnp.float32),
        ],
        compiler_params=pltpu.CompilerParams(dimension_semantics=("parallel",)),
    )(xp, wp, bp)

    # Tiny cross-tile reduction + BN coefficient math on [*, c_pad] slabs only.
    totals = jnp.sum(stats, axis=0)                 # [2, c_pad]
    mean = totals[0:1] / n
    ex2 = totals[1:2] / n
    # One-pass (biased) variance; safe since sigmoid outputs lie in [0, 1].
    var = jnp.maximum(ex2 - mean * mean, 0.0)
    inv_std = jax.lax.rsqrt(var + BN_EPS)
    a = gp * inv_std                                # [1, c_pad]
    c = bep - mean * a                              # [1, c_pad]

    out = pl.pallas_call(
        _bn_affine_kernel,
        grid=(num_tiles,),
        in_specs=[
            pl.BlockSpec((tile_n, c_pad), lambda i: (i, 0)),
            pl.BlockSpec((1, c_pad), lambda i: (0, 0)),
            pl.BlockSpec((1, c_pad), lambda i: (0, 0)),
        ],
        out_specs=pl.BlockSpec((tile_n, c_pad), lambda i: (i, 0)),
        out_shape=jax.ShapeDtypeStruct((n_pad, c_pad), jnp.float32),
        input_output_aliases={0: 0},   # normalize s in place
        compiler_params=pltpu.CompilerParams(dimension_semantics=("parallel",)),
    )(s, a, c)

    return out[:n, :common_dim]


def _reference(x, encoder, encoder_bias, bn_gamma, bn_beta):
    """Pure-JAX reference mirroring PyTorch forward (training-mode BN)."""
    z = x @ encoder + encoder_bias[None, :]
    s = jax.nn.sigmoid(z)
    mean = jnp.mean(s, axis=0, keepdims=True)
    var = jnp.mean((s - mean) ** 2, axis=0, keepdims=True)  # biased variance
    return bn_gamma[None, :] * (s - mean) / jnp.sqrt(var + BN_EPS) + bn_beta[None, :]


def _make_params(key, mono_dim, common_dim):
    k_w, k_b, k_g, k_be = jax.random.split(key, 4)
    limit = (6.0 / (mono_dim + common_dim)) ** 0.5
    encoder = jax.random.uniform(
        k_w, (mono_dim, common_dim), dtype=jnp.float32, minval=-limit, maxval=limit)
    encoder_bias = 0.1 * jax.random.normal(k_b, (common_dim,), dtype=jnp.float32)
    bn_gamma = 1.0 + 0.1 * jax.random.normal(k_g, (common_dim,), dtype=jnp.float32)
    bn_beta = 0.1 * jax.random.normal(k_be, (common_dim,), dtype=jnp.float32)
    return encoder, encoder_bias, bn_gamma, bn_beta


if __name__ == "__main__":
    mono_dim, common_dim = 16, 32
    key = jax.random.PRNGKey(0)
    k_params, k_x1, k_x2 = jax.random.split(key, 3)
    encoder, encoder_bias, bn_gamma, bn_beta = _make_params(k_params, mono_dim, common_dim)

    # Case 1: batch already sublane-aligned (no masking path).
    x1 = jax.random.normal(k_x1, (8, mono_dim), dtype=jnp.float32)
    out1 = jax.block_until_ready(
        embedding_proj(x1, encoder, encoder_bias, bn_gamma, bn_beta))
    ref1 = _reference(x1, encoder, encoder_bias, bn_gamma, bn_beta)
    assert out1.shape == (8, common_dim)
    assert jnp.allclose(out1, ref1, atol=1e-4, rtol=1e-4), (
        f"case1 max abs err = {float(jnp.max(jnp.abs(out1 - ref1)))}")

    # Case 2: ragged batch (exercises row masking + feature padding path).
    x2 = jax.random.normal(k_x2, (13, mono_dim), dtype=jnp.float32)
    out2 = jax.block_until_ready(
        embedding_proj(x2, encoder, encoder_bias, bn_gamma, bn_beta))
    ref2 = _reference(x2, encoder, encoder_bias, bn_gamma, bn_beta)
    assert out2.shape == (13, common_dim)
    assert jnp.allclose(out2, ref2, atol=1e-4, rtol=1e-4), (
        f"case2 max abs err = {float(jnp.max(jnp.abs(out2 - ref2)))}")

    print("KERNEL_OK")
</pallas_src>

<mosaic_0001>
module attributes {stable_mosaic.version = 11 : i64} {
  func.func @_proj_stats_kernel(%arg0: i32, %arg1: memref<8x16xf32, #tpu.memory_space<vmem>>, %arg2: memref<16x128xf32, #tpu.memory_space<vmem>>, %arg3: memref<1x128xf32, #tpu.memory_space<vmem>>, %arg4: memref<8x128xf32, #tpu.memory_space<vmem>>, %arg5: memref<1x2x128xf32, #tpu.memory_space<vmem>>) attributes {dimension_semantics = [#tpu.dimension_semantics<parallel>], iteration_bounds = array<i64: 1>, scalar_prefetch = 0 : i64, scratch_operands = 0 : i64, tpu.core_type = #tpu.core_type<tc>, window_params = [{transform_indices = @transform_0, window_bounds = array<i64: 8, 16>}, {pipeline_mode = #tpu.pipeline_mode<synchronous>, transform_indices = @transform_1, window_bounds = array<i64: 16, 128>}, {pipeline_mode = #tpu.pipeline_mode<synchronous>, transform_indices = @transform_2, window_bounds = array<i64: 1, 128>}, {transform_indices = @transform_3, window_bounds = array<i64: 8, 128>}, {transform_indices = @transform_4, window_bounds = array<i64: 1, 2, 128>}]} {
    %c0 = arith.constant 0 : index
    %c0_0 = arith.constant 0 : index
    %0 = vector.load %arg1[%c0, %c0_0] : memref<8x16xf32, #tpu.memory_space<vmem>>, vector<8x16xf32>
    %c0_1 = arith.constant 0 : index
    %c0_2 = arith.constant 0 : index
    %1 = vector.load %arg2[%c0_1, %c0_2] : memref<16x128xf32, #tpu.memory_space<vmem>>, vector<16x128xf32>
    %cst = arith.constant dense<0.000000e+00> : vector<8x128xf32>
    %2 = tpu.matmul %0, %1, %cst {dimension_numbers = #tpu.dot_dimension_numbers<[1], [0], [0], [1], [0, 0, 1, 1], [], []>} : vector<8x16xf32>, vector<16x128xf32>, vector<8x128xf32> -> vector<8x128xf32>
    %c0_3 = arith.constant 0 : index
    %c0_4 = arith.constant 0 : index
    %3 = vector.load %arg3[%c0_3, %c0_4] : memref<1x128xf32, #tpu.memory_space<vmem>>, vector<1x128xf32>
    %4 = vector.broadcast %3 : vector<1x128xf32> to vector<8x128xf32>
    %5 = arith.addf %2, %4 : vector<8x128xf32>
    %6 = arith.negf %5 : vector<8x128xf32>
    %7 = math.exp %6 : vector<8x128xf32>
    %cst_5 = arith.constant 1.000000e+00 : f32
    %8 = vector.broadcast %cst_5 : f32 to vector<8x128xf32>
    %9 = arith.addf %8, %7 : vector<8x128xf32>
    %10 = arith.divf %8, %9 : vector<8x128xf32>
    %c0_6 = arith.constant 0 : index
    %c0_7 = arith.constant 0 : index
    %11 = vector.load %arg4[%c0_6, %c0_7] : memref<8x128xf32, #tpu.memory_space<vmem>>, vector<8x128xf32>
    tpu.vector_store %arg4[%c0_6, %c0_7], %10 {strides = array<i32>} : memref<8x128xf32, #tpu.memory_space<vmem>>, vector<8x128xf32>,
    %cst_8 = arith.constant 1.000000e+00 : f32
    %12 = vector.broadcast %cst_8 : f32 to vector<1x8xf32>
    %cst_9 = arith.constant dense<0.000000e+00> : vector<1x128xf32>
    %13 = tpu.matmul %12, %10, %cst_9 {dimension_numbers = #tpu.dot_dimension_numbers<[1], [0], [0], [1], [0, 0, 1, 1], [], []>} : vector<1x8xf32>, vector<8x128xf32>, vector<1x128xf32> -> vector<1x128xf32>
    %14 = arith.mulf %10, %10 : vector<8x128xf32>
    %cst_10 = arith.constant dense<0.000000e+00> : vector<1x128xf32>
    %15 = tpu.matmul %12, %14, %cst_10 {dimension_numbers = #tpu.dot_dimension_numbers<[1], [0], [0], [1], [0, 0, 1, 1], [], []>} : vector<1x8xf32>, vector<8x128xf32>, vector<1x128xf32> -> vector<1x128xf32>
    %16 = tpu.concatenate %13, %15 in 0 : vector<1x128xf32>, vector<1x128xf32> -> vector<2x128xf32>
    %17 = vector.shape_cast %16 : vector<2x128xf32> to vector<1x2x128xf32>
    %c0_11 = arith.constant 0 : index
    %c0_12 = arith.constant 0 : index
    %c0_13 = arith.constant 0 : index
    %18 = vector.load %arg5[%c0_11, %c0_12, %c0_13] : memref<1x2x128xf32, #tpu.memory_space<vmem>>, vector<1x2x128xf32>
    tpu.vector_store %arg5[%c0_11, %c0_12, %c0_13], %17 {strides = array<i32>} : memref<1x2x128xf32, #tpu.memory_space<vmem>>, vector<1x2x128xf32>,
    return
  }
  func.func @transform_0(%arg0: i32) -> (i32, i32) {
    %c0_i32 = arith.constant 0 : i32
    %c0_i32_0 = arith.constant 0 : i32
    return %arg0, %c0_i32 : i32, i32
  }
  func.func @transform_1(%arg0: i32) -> (i32, i32) {
    %c0_i32 = arith.constant 0 : i32
    %c0_i32_0 = arith.constant 0 : i32
    %c0_i32_1 = arith.constant 0 : i32
    return %c0_i32, %c0_i32_0 : i32, i32
  }
  func.func @transform_2(%arg0: i32) -> (i32, i32) {
    %c0_i32 = arith.constant 0 : i32
    %c0_i32_0 = arith.constant 0 : i32
    %c0_i32_1 = arith.constant 0 : i32
    return %c0_i32, %c0_i32_0 : i32, i32
  }
  func.func @transform_3(%arg0: i32) -> (i32, i32) {
    %c0_i32 = arith.constant 0 : i32
    %c0_i32_0 = arith.constant 0 : i32
    return %arg0, %c0_i32 : i32, i32
  }
  func.func @transform_4(%arg0: i32) -> (i32, i32, i32) {
    %c0_i32 = arith.constant 0 : i32
    %c0_i32_0 = arith.constant 0 : i32
    %c0_i32_1 = arith.constant 0 : i32
    return %arg0, %c0_i32, %c0_i32_0 : i32, i32, i32
  }
}

module attributes {stable_mosaic.version = 11 : i64} {
  func.func @_bn_affine_kernel(%arg0: i32, %arg1: memref<8x128xf32, #tpu.memory_space<vmem>>, %arg2: memref<1x128xf32, #tpu.memory_space<vmem>>, %arg3: memref<1x128xf32, #tpu.memory_space<vmem>>, %arg4: memref<8x128xf32, #tpu.memory_space<vmem>>) attributes {dimension_semantics = [#tpu.dimension_semantics<parallel>], iteration_bounds = array<i64: 1>, scalar_prefetch = 0 : i64, scratch_operands = 0 : i64, tpu.core_type = #tpu.core_type<tc>, window_params = [{transform_indices = @transform_0, window_bounds = array<i64: 8, 128>}, {pipeline_mode = #tpu.pipeline_mode<synchronous>, transform_indices = @transform_1, window_bounds = array<i64: 1, 128>}, {pipeline_mode = #tpu.pipeline_mode<synchronous>, transform_indices = @transform_2, window_bounds = array<i64: 1, 128>}, {transform_indices = @transform_3, window_bounds = array<i64: 8, 128>}]} {
    %c0 = arith.constant 0 : index
    %c0_0 = arith.constant 0 : index
    %0 = vector.load %arg1[%c0, %c0_0] : memref<8x128xf32, #tpu.memory_space<vmem>>, vector<8x128xf32>
    %c0_1 = arith.constant 0 : index
    %c0_2 = arith.constant 0 : index
    %1 = vector.load %arg2[%c0_1, %c0_2] : memref<1x128xf32, #tpu.memory_space<vmem>>, vector<1x128xf32>
    %2 = vector.broadcast %1 : vector<1x128xf32> to vector<8x128xf32>
    %3 = arith.mulf %0, %2 : vector<8x128xf32>
    %c0_3 = arith.constant 0 : index
    %c0_4 = arith.constant 0 : index
    %4 = vector.load %arg3[%c0_3, %c0_4] : memref<1x128xf32, #tpu.memory_space<vmem>>, vector<1x128xf32>
    %5 = vector.broadcast %4 : vector<1x128xf32> to vector<8x128xf32>
    %6 = arith.addf %3, %5 : vector<8x128xf32>
    %c0_5 = arith.constant 0 : index
    %c0_6 = arith.constant 0 : index
    %7 = vector.load %arg4[%c0_5, %c0_6] : memref<8x128xf32, #tpu.memory_space<vmem>>, vector<8x128xf32>
    tpu.vector_store %arg4[%c0_5, %c0_6], %6 {strides = array<i32>} : memref<8x128xf32, #tpu.memory_space<vmem>>, vector<8x128xf32>,
    return
  }
  func.func @transform_0(%arg0: i32) -> (i32, i32) {
    %c0_i32 = arith.constant 0 : i32
    %c0_i32_0 = arith.constant 0 : i32
    return %arg0, %c0_i32 : i32, i32
  }
  func.func @transform_1(%arg0: i32) -> (i32, i32) {
    %c0_i32 = arith.constant 0 : i32
    %c0_i32_0 = arith.constant 0 : i32
    %c0_i32_1 = arith.constant 0 : i32
    return %c0_i32, %c0_i32_0 : i32, i32
  }
  func.func @transform_2(%arg0: i32) -> (i32, i32) {
    %c0_i32 = arith.constant 0 : i32
    %c0_i32_0 = arith.constant 0 : i32
    %c0_i32_1 = arith.constant 0 : i32
    return %c0_i32, %c0_i32_0 : i32, i32
  }
  func.func @transform_3(%arg0: i32) -> (i32, i32) {
    %c0_i32 = arith.constant 0 : i32
    %c0_i32_0 = arith.constant 0 : i32
    return %arg0, %c0_i32 : i32, i32
  }
}

</mosaic_0001>

<llo_original>
// kernel: embedding_proj.3
$region0: #{embedding_proj.3}
  #allocation0 [shape = 'u32[]', space=smem, size = 0x4, offset = 0x4, fixed_abs, tag = 'smem constant byte address 0x4 - core index']
  #allocation1 [shape = 'u32[144,128]{1,0:T(1,128)}', space=vmem, size = 0x12000, scoped, tag = 'internal scratch']
  %s0 = inlined_call_operand.vmem [shape: f32[8,128], index: 0, kind: input, shape index: {}, may-alias: {0,3}]
  %s1 = inlined_call_operand.vmem [shape: f32[1,128], index: 1, kind: input, shape index: {}]
  %s2 = inlined_call_operand.vmem [shape: f32[1,128], index: 2, kind: input, shape index: {}]
  %s3 = inlined_call_operand.vmem [shape: f32[8,128], index: 3, kind: output, shape index: {}, may-alias: {0,3}]
  %s4 = sld [smem:[#allocation0]]
  $region22: #{embedding_proj.3} parent=0
    _
  %s6 = ssub.s32 1, %s4
  %s7 = scalar_select 0, %s6, %s4
  // Predicated region
  $region2: #{embedding_proj.3} parent=0 // pred_check
    _
  $region3: #{embedding_proj.3} parent=0 // pred_check_branch
    %9 = sbr.rel (0) target = $region5
  $region4: #{embedding_proj.3} parent=0 // pred_region
    _
  $region5: #{embedding_proj.3} parent=0 // pred_fallthru
    _
  // Predicated region
  $region6: #{embedding_proj.3} parent=0 // pred_check
    _
  $region7: #{embedding_proj.3} parent=0 // pred_check_branch
    %11 = sbr.rel (0) target = $region9
  $region8: #{embedding_proj.3} parent=0 // pred_region
    _
  $region9: #{embedding_proj.3} parent=0 // pred_fallthru
    _
  // Predicated region
  $region10: #{embedding_proj.3} parent=0 // pred_check
    _
  $region11: #{embedding_proj.3} parent=0 // pred_check_branch
    %13 = sbr.rel (0) target = $region13
  $region12: #{embedding_proj.3} parent=0 // pred_region
    _
  $region13: #{embedding_proj.3} parent=0 // pred_fallthru
    _
  %v14 = vld [vmem:[%s0] sm:$0xff]
  %v15 = vld [vmem:[%s1] sm:$0x1]
  %v17 = vlaneseq
  %v18 = vshrl.u32 %v17, 7
  %v19 = vsub.s32 0, %v18
  %v20 = vrot.slane %v15, %v19
  %v22 = vmul.f32 %v14, %v20
  %v23 = vld [vmem:[%s2] sm:$0x1]
  %v25 = vlaneseq
  %v26 = vshrl.u32 %v25, 7
  %v27 = vsub.s32 0, %v26
  %v28 = vrot.slane %v23, %v27
  %v30 = vadd.f32 %v22, %v28
  %31 = vst [vmem:[%s3] sm:$0xff] %v30
  // Predicated region
  $region14: #{embedding_proj.3} parent=0 // pred_check
    _
  $region15: #{embedding_proj.3} parent=0 // pred_check_branch
    %33 = sbr.rel (0) target = $region17
  $region16: #{embedding_proj.3} parent=0 // pred_region
    _
  $region17: #{embedding_proj.3} parent=0 // pred_fallthru
    _
  // Predicated region
  $region18: #{embedding_proj.3} parent=0 // pred_check
    _
  $region19: #{embedding_proj.3} parent=0 // pred_check_branch
    %35 = sbr.rel (0) target = $region21
  $region20: #{embedding_proj.3} parent=0 // pred_region
    _
  $region21: #{embedding_proj.3} parent=0 // pred_fallthru
    _

// kernel: embedding_proj.2
$region0: #{embedding_proj.2}
  #allocation0 [shape = 'u32[]', space=smem, size = 0x4, offset = 0x4, fixed_abs, tag = 'smem constant byte address 0x4 - core index']
  #allocation1 [shape = 'u32[144,128]{1,0:T(1,128)}', space=vmem, size = 0x12000, scoped, tag = 'internal scratch']
  %s0 = inlined_call_operand.vmem [shape: f32[8,16], index: 0, kind: input, shape index: {}]
  %s1 = inlined_call_operand.vmem [shape: f32[16,128], index: 1, kind: input, shape index: {}]
  %s2 = inlined_call_operand.vmem [shape: f32[1,128], index: 2, kind: input, shape index: {}]
  %s3 = inlined_call_operand.vmem [shape: f32[8,128], index: 3, kind: output, shape index: {0}]
  %s4 = inlined_call_operand.vmem [shape: f32[1,2,128], index: 4, kind: output, shape index: {1}]
  %5 = xla_tuple %s3, %s4
  %s6 = sld [smem:[#allocation0]]
  $region30: #{embedding_proj.2} parent=0
    _
  %s8 = ssub.s32 1, %s6
  %s9 = scalar_select 0, %s8, %s6
  // Predicated region
  $region2: #{embedding_proj.2} parent=0 // pred_check
    _
  $region3: #{embedding_proj.2} parent=0 // pred_check_branch
    %11 = sbr.rel (0) target = $region5
  $region4: #{embedding_proj.2} parent=0 // pred_region
    _
  $region5: #{embedding_proj.2} parent=0 // pred_fallthru
    _
  // Predicated region
  $region6: #{embedding_proj.2} parent=0 // pred_check
    _
  $region7: #{embedding_proj.2} parent=0 // pred_check_branch
    %13 = sbr.rel (0) target = $region9
  $region8: #{embedding_proj.2} parent=0 // pred_region
    _
  $region9: #{embedding_proj.2} parent=0 // pred_fallthru
    _
  // Predicated region
  $region10: #{embedding_proj.2} parent=0 // pred_check
    _
  $region11: #{embedding_proj.2} parent=0 // pred_check_branch
    %15 = sbr.rel (0) target = $region13
  $region12: #{embedding_proj.2} parent=0 // pred_region
    _
  $region13: #{embedding_proj.2} parent=0 // pred_fallthru
    _
  %v16 = vld [vmem:[%s0] sm:$0xff]
  %v17 = vld [vmem:[%s1] sm:$0xff]
  %v18 = vld [vmem:[%s1 + $0x8] sm:$0xff]
  %v19 = vld [vmem:[%s2] sm:$0x1]
  %v21 = vlaneseq
  %v22 = vshrl.u32 %v21, 7
  %v23 = vsub.s32 0, %v22
  %v24 = vrot.slane %v19, %v23
  %vm26 = vcmask 130048
  %v28 = vsel %vm26, %v16, 0
  %30 = vmatprep.subr.mxu0 0.0
  %31 = vmatpush1.msra.mxu0 %v17
  %32 = vmatprep.subr.mxu0 0.0
  %33 = vmatpush1.msra.mxu0 %v18
  %34 = vmatprep.subr.mxu0 0.0
  %35 = vmatpush1.msra.mxu0 0.0
  %36 = vmatprep.subr.mxu0 0.0
  %37 = vmatpush1.msra.mxu0 0.0
  %38 = vmatprep.subr.mxu0 0.0
  %39 = vmatpush1.msra.mxu0 0.0
  %40 = vmatprep.subr.mxu0 0.0
  %41 = vmatpush1.msra.mxu0 0.0
  %42 = vmatprep.subr.mxu0 0.0
  %43 = vmatpush1.msra.mxu0 0.0
  %44 = vmatprep.subr.mxu0 0.0
  %45 = vmatpush1.msra.mxu0 0.0
  %46 = vmatprep.subr.mxu0 0.0
  %47 = vmatpush1.msra.mxu0 0.0
  %48 = vmatprep.subr.mxu0 0.0
  %49 = vmatpush1.msra.mxu0 0.0
  %50 = vmatprep.subr.mxu0 0.0
  %51 = vmatpush1.msra.mxu0 0.0
  %52 = vmatprep.subr.mxu0 0.0
  %53 = vmatpush1.msra.mxu0 0.0
  %54 = vmatprep.subr.mxu0 0.0
  %55 = vmatpush1.msra.mxu0 0.0
  %56 = vmatprep.subr.mxu0 0.0
  %57 = vmatpush1.msra.mxu0 0.0
  %58 = vmatprep.subr.mxu0 0.0
  %59 = vmatpush1.msra.mxu0 0.0
  %60 = vmatprep.subr.mxu0 0.0
  %61 = vmatpush1.msra.mxu0 0.0
  %62 = vmatprep.subr.mxu0 0.0
  %63 = vmatpush1.msra.mxu0 0.0
  %64 = vmatprep.subr.mxu0 0.0
  %65 = vmatpush1.msra.mxu0 0.0
  %66 = vmatprep.subr.mxu0 0.0
  %67 = vmatpush1.msra.mxu0 0.0
  %68 = vmatprep.subr.mxu0 0.0
  %69 = vmatpush1.msra.mxu0 0.0
  %70 = vmatprep.subr.mxu0 0.0
  %71 = vmatpush1.msra.mxu0 0.0
  %72 = vmatprep.subr.mxu0 0.0
  %73 = vmatpush1.msra.mxu0 0.0
  %74 = vmatprep.subr.mxu0 0.0
  %75 = vmatpush1.msra.mxu0 0.0
  %76 = vmatprep.subr.mxu0 0.0
  %77 = vmatpush1.msra.mxu0 0.0
  %78 = vmatprep.subr.mxu0 0.0
  %79 = vmatpush1.msra.mxu0 0.0
  %80 = vmatprep.subr.mxu0 0.0
  %81 = vmatpush1.msra.mxu0 0.0
  %82 = vmatprep.subr.mxu0 0.0
  %83 = vmatpush1.msra.mxu0 0.0
  %84 = vmatprep.subr.mxu0 0.0
  %85 = vmatpush1.msra.mxu0 0.0
  %86 = vmatprep.subr.mxu0 0.0
  %87 = vmatpush1.msra.mxu0 0.0
  %88 = vmatprep.subr.mxu0 0.0
  %89 = vmatpush1.msra.mxu0 0.0
  %90 = vmatprep.subr.mxu0 0.0
  %91 = vmatpush1.msra.mxu0 0.0
  %92 = vmatprep.subr.mxu0 0.0
  %93 = vmatpush1.msra.mxu0 0.0
  %94 = vmatprep.mubr.f32.mxu0 0.0
  %95 = vmatmul.mubr.f32.gmra.mrb[0].mxu0 %v28
  %v96 = vpop.f32.mrb[0].mxu0
  %v97 = vadd.f32 %v24, %v96
  %v98 = vpop.f32.mrb[0].mxu0
  %99 = vdwg.mxu0
  %v100 = vxor.u32 %v97, 2147483648
  %v101 = vmul.f32 %v100, 1.442695
  %v102 = vpow.pop %v101
  %v103 = vadd.f32 %v102, 1.0
  %v104 = vrcp.pop %v103
  %v105 = vmul.f32 1.0, %v104
  %106 = vst [vmem:[%s3] sm:$0xff] %v105
  %vm107 = vcmask 64512
  %v109 = vsel %vm107, 1.0, 0
  %111 = vmatprep.subr.mxu0 0.0
  %112 = vmatpush1.msra.mxu0 %v105
  %113 = vmatprep.subr.mxu0 0.0
  %114 = vmatpush1.msra.mxu0 0.0
  %115 = vmatprep.subr.mxu0 0.0
  %116 = vmatpush1.msra.mxu0 0.0
  %117 = vmatprep.subr.mxu0 0.0
  %118 = vmatpush1.msra.mxu0 0.0
  %119 = vmatprep.subr.mxu0 0.0
  %120 = vmatpush1.msra.mxu0 0.0
  %121 = vmatprep.subr.mxu0 0.0
  %122 = vmatpush1.msra.mxu0 0.0
  %123 = vmatprep.subr.mxu0 0.0
  %124 = vmatpush1.msra.mxu0 0.0
  %125 = vmatprep.subr.mxu0 0.0
  %126 = vmatpush1.msra.mxu0 0.0
  %127 = vmatprep.subr.mxu0 0.0
  %128 = vmatpush1.msra.mxu0 0.0
  %129 = vmatprep.subr.mxu0 0.0
  %130 = vmatpush1.msra.mxu0 0.0
  %131 = vmatprep.subr.mxu0 0.0
  %132 = vmatpush1.msra.mxu0 0.0
  %133 = vmatprep.subr.mxu0 0.0
  %134 = vmatpush1.msra.mxu0 0.0
  %135 = vmatprep.subr.mxu0 0.0
  %136 = vmatpush1.msra.mxu0 0.0
  %137 = vmatprep.subr.mxu0 0.0
  %138 = vmatpush1.msra.mxu0 0.0
  %139 = vmatprep.subr.mxu0 0.0
  %140 = vmatpush1.msra.mxu0 0.0
  %141 = vmatprep.subr.mxu0 0.0
  %142 = vmatpush1.msra.mxu0 0.0
  %143 = vmatprep.subr.mxu0 0.0
  %144 = vmatpush1.msra.mxu0 0.0
  %145 = vmatprep.subr.mxu0 0.0
  %146 = vmatpush1.msra.mxu0 0.0
  %147 = vmatprep.subr.mxu0 0.0
  %148 = vmatpush1.msra.mxu0 0.0
  %149 = vmatprep.subr.mxu0 0.0
  %150 = vmatpush1.msra.mxu0 0.0
  %151 = vmatprep.subr.mxu0 0.0
  %152 = vmatpush1.msra.mxu0 0.0
  %153 = vmatprep.subr.mxu0 0.0
  %154 = vmatpush1.msra.mxu0 0.0
  %155 = vmatprep.subr.mxu0 0.0
  %156 = vmatpush1.msra.mxu0 0.0
  %157 = vmatprep.subr.mxu0 0.0
  %158 = vmatpush1.msra.mxu0 0.0
  %159 = vmatprep.subr.mxu0 0.0
  %160 = vmatpush1.msra.mxu0 0.0
  %161 = vmatprep.subr.mxu0 0.0
  %162 = vmatpush1.msra.mxu0 0.0
  %163 = vmatprep.subr.mxu0 0.0
  %164 = vmatpush1.msra.mxu0 0.0
  %165 = vmatprep.subr.mxu0 0.0
  %166 = vmatpush1.msra.mxu0 0.0
  %167 = vmatprep.subr.mxu0 0.0
  %168 = vmatpush1.msra.mxu0 0.0
  %169 = vmatprep.subr.mxu0 0.0
  %170 = vmatpush1.msra.mxu0 0.0
  %171 = vmatprep.subr.mxu0 0.0
  %172 = vmatpush1.msra.mxu0 0.0
  %173 = vmatprep.subr.mxu0 0.0
  %174 = vmatpush1.msra.mxu0 0.0
  %175 = vmatprep.mubr.f32.mxu0 0.0
  %176 = vmatmul.mubr.f32.gmra.mrb[0].mxu0 %v109
  %v177 = vpop.f32.mrb[0].mxu0
  %v178 = vadd.f32 0.0, %v177
  %v179 = vpop.f32.mrb[0].mxu0
  %180 = vdwg.mxu0
  %v181 = vmul.f32 %v105, %v105
  %182 = vmatprep.subr.mxu0 0.0
  %183 = vmatpush1.msra.mxu0 %v181
  %184 = vmatprep.subr.mxu0 0.0
  %185 = vmatpush1.msra.mxu0 0.0
  %186 = vmatprep.subr.mxu0 0.0
  %187 = vmatpush1.msra.mxu0 0.0
  %188 = vmatprep.subr.mxu0 0.0
  %189 = vmatpush1.msra.mxu0 0.0
  %190 = vmatprep.subr.mxu0 0.0
  %191 = vmatpush1.msra.mxu0 0.0
  %192 = vmatprep.subr.mxu0 0.0
  %193 = vmatpush1.msra.mxu0 0.0
  %194 = vmatprep.subr.mxu0 0.0
  %195 = vmatpush1.msra.mxu0 0.0
  %196 = vmatprep.subr.mxu0 0.0
  %197 = vmatpush1.msra.mxu0 0.0
  %198 = vmatprep.subr.mxu0 0.0
  %199 = vmatpush1.msra.mxu0 0.0
  %200 = vmatprep.subr.mxu0 0.0
  %201 = vmatpush1.msra.mxu0 0.0
  %202 = vmatprep.subr.mxu0 0.0
  %203 = vmatpush1.msra.mxu0 0.0
  %204 = vmatprep.subr.mxu0 0.0
  %205 = vmatpush1.msra.mxu0 0.0
  %206 = vmatprep.subr.mxu0 0.0
  %207 = vmatpush1.msra.mxu0 0.0
  %208 = vmatprep.subr.mxu0 0.0
  %209 = vmatpush1.msra.mxu0 0.0
  %210 = vmatprep.subr.mxu0 0.0
  %211 = vmatpush1.msra.mxu0 0.0
  %212 = vmatprep.subr.mxu0 0.0
  %213 = vmatpush1.msra.mxu0 0.0
  %214 = vmatprep.subr.mxu0 0.0
  %215 = vmatpush1.msra.mxu0 0.0
  %216 = vmatprep.subr.mxu0 0.0
  %217 = vmatpush1.msra.mxu0 0.0
  %218 = vmatprep.subr.mxu0 0.0
  %219 = vmatpush1.msra.mxu0 0.0
  %220 = vmatprep.subr.mxu0 0.0
  %221 = vmatpush1.msra.mxu0 0.0
  %222 = vmatprep.subr.mxu0 0.0
  %223 = vmatpush1.msra.mxu0 0.0
  %224 = vmatprep.subr.mxu0 0.0
  %225 = vmatpush1.msra.mxu0 0.0
  %226 = vmatprep.subr.mxu0 0.0
  %227 = vmatpush1.msra.mxu0 0.0
  %228 = vmatprep.subr.mxu0 0.0
  %229 = vmatpush1.msra.mxu0 0.0
  %230 = vmatprep.subr.mxu0 0.0
  %231 = vmatpush1.msra.mxu0 0.0
  %232 = vmatprep.subr.mxu0 0.0
  %233 = vmatpush1.msra.mxu0 0.0
  %234 = vmatprep.subr.mxu0 0.0
  %235 = vmatpush1.msra.mxu0 0.0
  %236 = vmatprep.subr.mxu0 0.0
  %237 = vmatpush1.msra.mxu0 0.0
  %238 = vmatprep.subr.mxu0 0.0
  %239 = vmatpush1.msra.mxu0 0.0
  %240 = vmatprep.subr.mxu0 0.0
  %241 = vmatpush1.msra.mxu0 0.0
  %242 = vmatprep.subr.mxu0 0.0
  %243 = vmatpush1.msra.mxu0 0.0
  %244 = vmatprep.subr.mxu0 0.0
  %245 = vmatpush1.msra.mxu0 0.0
  %246 = vmatprep.mubr.f32.mxu0 0.0
  %247 = vmatmul.mubr.f32.gmra.mrb[0].mxu0 %v109
  %v248 = vpop.f32.mrb[0].mxu0
  %v249 = vadd.f32 0.0, %v248
  %v250 = vpop.f32.mrb[0].mxu0
  %251 = vdwg.mxu0
  %v253 = vrot.slane %v249, 7
  %vm255 = vcmask 1040384
  %v256 = vsel %vm255, %v178, %v253
  %257 = vst [vmem:[%s4] sm:$0x3] %v256
  // Predicated region
  $region14: #{embedding_proj.2} parent=0 // pred_check
    _
  $region15: #{embedding_proj.2} parent=0 // pred_check_branch
    %259 = sbr.rel (0) target = $region17
  $region16: #{embedding_proj.2} parent=0 // pred_region
    _
  $region17: #{embedding_proj.2} parent=0 // pred_fallthru
    _
  // Predicated region
  $region18: #{embedding_proj.2} parent=0 // pred_check
    _
  $region19: #{embedding_proj.2} parent=0 // pred_check_branch
    %261 = sbr.rel (0) target = $region21
  $region20: #{embedding_proj.2} parent=0 // pred_region
    _
  $region21: #{embedding_proj.2} parent=0 // pred_fallthru
    _
  // Predicated region
  $region22: #{embedding_proj.2} parent=0 // pred_check
    _
  $region23: #{embedding_proj.2} parent=0 // pred_check_branch
    %263 = sbr.rel (0) target = $region25
  $region24: #{embedding_proj.2} parent=0 // pred_region
    _
  $region25: #{embedding_proj.2} parent=0 // pred_fallthru
    _
  // Predicated region
  $region26: #{embedding_proj.2} parent=0 // pred_check
    _
  $region27: #{embedding_proj.2} parent=0 // pred_check_branch
    %265 = sbr.rel (0) target = $region29
  $region28: #{embedding_proj.2} parent=0 // pred_region
    _
  $region29: #{embedding_proj.2} parent=0 // pred_fallthru
    _

</llo_original>
